<compile_context>
chip_gen: v7x
topology: tpu7x:2x2x1
jax: 0.10.0
libtpu: 0.0.40
codegen_flags: <defaults>
</compile_context>

<pallas_src>
import functools
import math

import jax
import jax.numpy as jnp
from jax import lax
from jax.experimental import pallas as pl
from jax.experimental.pallas import tpu as pltpu

_INV_SQRT2 = 1.0 / math.sqrt(2.0)


def _round_up(x, m):
    return ((x + m - 1) // m) * m


def _device_kind():
    try:
        return jax.devices()[0].device_kind.lower()
    except Exception:
        return ""


def _is_v7x():
    kind = _device_kind()
    return ("v7" in kind) or ("7x" in kind)


def _projection_head_kernel(x_ref, w1_ref, w2_ref, p_ref, o_ref, *, approximate_gelu):
    # p_ref packs [b1; b2; gamma; beta] as a [4, prj_dim] f32 block.
    # (kept as (1, prj) row slices; the per-use sublane broadcast is cheap relative
    #  to the two matmuls)
    p = p_ref[...]
    b1, b2, gamma, beta = p[0:1, :], p[1:2, :], p[2:3, :], p[3:4, :]

    # prj = x @ W1 + b1   (MXU, f32 accumulation; inputs may be bf16)
    prj = jnp.dot(x_ref[...], w1_ref[...],
                  preferred_element_type=jnp.float32) + b1

    if approximate_gelu:
        # tanh-approx GELU: transcendental goes to the EUP slot (co-issues with MXU/VALU).
        g = jax.nn.gelu(prj, approximate=True)
    else:
        # exact erf-GELU (matches torch.nn.GELU default) in f32.
        g = 0.5 * prj * (1.0 + lax.erf(prj * _INV_SQRT2))

    # fc: y = gelu(prj) @ W2 + b2   (cast to W2's dtype so bf16 hits the MXU bf16 path)
    y = jnp.dot(g.astype(w2_ref.dtype), w2_ref[...],
                preferred_element_type=jnp.float32) + b2

    # Dropout(p=0.1) is identity in eval mode.
    # TODO(synk): training-mode dropout (pltpu.prng_* mask) not emitted.
    y = y + prj                                                  # residual

    # LayerNorm over last dim (eps = 1e-5, PyTorch default), f32.
    # One-pass statistics: both lane reductions issue back-to-back on the XLU slot.
    inv_n = 1.0 / y.shape[-1]
    s1 = jnp.sum(y, axis=-1, keepdims=True)
    s2 = jnp.sum(y * y, axis=-1, keepdims=True)
    mean = s1 * inv_n
    var = jnp.maximum(s2 * inv_n - mean * mean, 0.0)
    y_hat = (y - mean) * lax.rsqrt(var + 1e-5)
    o_ref[...] = (y_hat * gamma + beta).astype(o_ref.dtype)


def _pick_tb(b8, multi_tc):
    """Pick the batch tile: as big as possible (<=256), split only on 2-TC chips,
    and prefer a tile that divides the 8-rounded batch (avoids a host-side pad)."""
    cap = min(256, b8)
    if multi_tc and b8 >= 16:
        # keep >= 2 grid steps so both v7x TensorCores get work
        cap = min(cap, _round_up(pl.cdiv(b8, 2), 8))
    cap = max(cap, 8)
    # largest multiple of 8 <= cap that divides b8, without dropping below cap/2
    t = (cap // 8) * 8
    floor = max(8, cap // 2)
    while t >= floor:
        if b8 % t == 0:
            return t
        t -= 8
    return cap  # no good divisor: pad the batch to a multiple of cap instead


def projection_head(x, w1_t, b1, w2_t, b2, gamma, beta, *,
                    tb=None, use_bf16_matmul=True, approximate_gelu=False):
    """x: [B, emb_dim]; w1_t: [emb_dim, prj_dim]; w2_t: [prj_dim, prj_dim];
    b1/b2/gamma/beta: [prj_dim] or [1, prj_dim].  Returns [B, prj_dim]."""
    B, emb_dim = x.shape
    prj_dim = w1_t.shape[1]
    assert w1_t.shape[0] == emb_dim and w2_t.shape == (prj_dim, prj_dim)
    # Real CLIP prj_dim is 256 (multiple of 128); LN over a padded last dim would be
    # wrong, so we require lane alignment here.
    # TODO(synk): masked LayerNorm for prj_dim not a multiple of 128.
    assert prj_dim % 128 == 0, "prj_dim must be a multiple of 128"
    out_dtype = x.dtype

    is_v7 = _is_v7x()

    # ---- batch tiling (generation-aware: only split for the 2-TC v7x) ----
    b8 = _round_up(max(B, 8), 8)
    if tb is None:
        tb = _pick_tb(b8, multi_tc=is_v7)
    B_pad = _round_up(b8, tb)

    # ---- pad the contraction dim (K) to full lanes; zeros are exact for matmul ----
    k_pad = _round_up(emb_dim, 128)

    compute_dtype = jnp.bfloat16 if use_bf16_matmul else x.dtype
    xp = x.astype(compute_dtype)
    if B_pad != B or k_pad != emb_dim:
        xp = jnp.pad(xp, ((0, B_pad - B), (0, k_pad - emb_dim)))
    w1p = w1_t.astype(compute_dtype)
    if k_pad != emb_dim:
        w1p = jnp.pad(w1p, ((0, k_pad - emb_dim), (0, 0)))
    w2p = w2_t.astype(compute_dtype)
    # TODO(synk): optional fp8 weight path for v7x (bf16 x, fp8 W1/W2, f32 acc).

    # fold the four per-channel vectors into one grid-invariant [4, prj_dim] operand
    params = jnp.concatenate(
        [jnp.reshape(v, (1, prj_dim)).astype(jnp.float32)
         for v in (b1, b2, gamma, beta)], axis=0)

    grid = (B_pad // tb,)

    # deeper x buffering on 128 MiB-VMEM chips with a large contraction dim
    x_bufs = 3 if (not is_v7 and emb_dim >= 1024) else 2

    # ---- explicit VMEM budget (conservative: counts invariants double-buffered) ----
    cb = jnp.dtype(compute_dtype).itemsize
    ob = jnp.dtype(out_dtype).itemsize
    est = (x_bufs * tb * k_pad * cb           # x tile
           + 2 * k_pad * prj_dim * cb         # W1
           + 2 * prj_dim * prj_dim * cb       # W2
           + 2 * 4 * prj_dim * 4              # packed params
           + 2 * tb * prj_dim * ob)           # out tile
    est += 4 * tb * prj_dim * 4               # in-kernel f32 temporaries
    vmem_cap = (48 << 20) if is_v7 else (96 << 20)
    vmem_limit = int(min(vmem_cap, max(est + (8 << 20), 32 << 20)))

    kernel = functools.partial(_projection_head_kernel,
                               approximate_gelu=approximate_gelu)

    def _build(single_buffer_invariants):
        w_pm = ({"pipeline_mode": pl.Buffered(1)}
                if single_buffer_invariants else {})
        x_pm = ({"pipeline_mode": pl.Buffered(x_bufs)}
                if (single_buffer_invariants and x_bufs != 2) else {})
        return pl.pallas_call(
            kernel,
            out_shape=jax.ShapeDtypeStruct((B_pad, prj_dim), out_dtype),
            grid_spec=pltpu.PrefetchScalarGridSpec(
                num_scalar_prefetch=0,
                grid=grid,
                in_specs=[
                    pl.BlockSpec((tb, k_pad), lambda i: (i, 0), **x_pm),      # x tile
                    pl.BlockSpec((k_pad, prj_dim), lambda i: (0, 0), **w_pm), # W1^T
                    pl.BlockSpec((prj_dim, prj_dim), lambda i: (0, 0), **w_pm),  # W2^T
                    pl.BlockSpec((4, prj_dim), lambda i: (0, 0), **w_pm),     # params
                ],
                out_specs=pl.BlockSpec((tb, prj_dim), lambda i: (i, 0)),
            ),
            compiler_params=pltpu.CompilerParams(
                dimension_semantics=("parallel",),
                vmem_limit_bytes=vmem_limit),
        )

    try:
        out = _build(True)(xp, w1p, w2p, params)
    except Exception:
        # fallback: default (double-buffered) pipelining if pipeline_mode is rejected
        out = _build(False)(xp, w1p, w2p, params)

    return out[:B]


def projection_head_ref(x, w1_t, b1, w2_t, b2, gamma, beta):
    x = x.astype(jnp.float32)
    prj = x @ w1_t + b1.reshape(1, -1)
    g = 0.5 * prj * (1.0 + lax.erf(prj * _INV_SQRT2))
    y = g @ w2_t + b2.reshape(1, -1)
    y = y + prj
    mean = jnp.mean(y, axis=-1, keepdims=True)
    var = jnp.mean(jnp.square(y - mean), axis=-1, keepdims=True)
    return (y - mean) * lax.rsqrt(var + 1e-5) * gamma.reshape(1, -1) + beta.reshape(1, -1)


def _make_params(key, emb_dim, prj_dim):
    k1, k2, kb1, kb2, kg, kb = jax.random.split(key, 6)
    bound1 = 1.0 / math.sqrt(emb_dim)
    bound2 = 1.0 / math.sqrt(prj_dim)
    w1_t = jax.random.uniform(k1, (emb_dim, prj_dim), jnp.float32, -bound1, bound1)
    b1 = jax.random.uniform(kb1, (prj_dim,), jnp.float32, -bound1, bound1)
    w2_t = jax.random.uniform(k2, (prj_dim, prj_dim), jnp.float32, -bound2, bound2)
    b2 = jax.random.uniform(kb2, (prj_dim,), jnp.float32, -bound2, bound2)
    gamma = 1.0 + 0.1 * jax.random.normal(kg, (prj_dim,), jnp.float32)
    beta = 0.1 * jax.random.normal(kb, (prj_dim,), jnp.float32)
    return w1_t, b1, w2_t, b2, gamma, beta


if __name__ == "__main__":
    key = jax.random.PRNGKey(0)
    kxa, kpa, kxb, kpb = jax.random.split(key, 4)

    # --- case A: lane-aligned dims (scaled-down image-projection head) ---
    Ba, emb_a, prj_a = 8, 256, 128
    xa = jax.random.normal(kxa, (Ba, emb_a), dtype=jnp.float32)
    pa = _make_params(kpa, emb_a, prj_a)
    ref_a = projection_head_ref(xa, *pa)

    # default path: bf16 MXU inputs, f32 accumulation / GELU / LN
    out_a = jax.block_until_ready(projection_head(xa, *pa))
    assert out_a.shape == (Ba, prj_a)
    assert jnp.allclose(out_a, ref_a, atol=5e-2, rtol=5e-2), "case A (bf16) mismatch"

    # f32 opt-out: exact erf-GELU, tight tolerance
    out_a32 = jax.block_until_ready(projection_head(xa, *pa, use_bf16_matmul=False))
    assert jnp.allclose(out_a32, ref_a, atol=1e-5, rtol=1e-5), "case A (f32) mismatch"

    # tanh-approx GELU flag (EUP path), loose tolerance
    out_a_tanh = jax.block_until_ready(
        projection_head(xa, *pa, approximate_gelu=True))
    assert jnp.allclose(out_a_tanh, ref_a, atol=5e-2, rtol=5e-2), "case A (tanh) mismatch"

    # --- case B: unaligned batch (12) and unaligned K (40) -> exercises padding ---
    Bb, emb_b, prj_b = 12, 40, 128
    xb = jax.random.normal(kxb, (Bb, emb_b), dtype=jnp.float32)
    pb = _make_params(kpb, emb_b, prj_b)
    ref_b = projection_head_ref(xb, *pb)
    out_b32 = jax.block_until_ready(projection_head(xb, *pb, use_bf16_matmul=False))
    assert out_b32.shape == (Bb, prj_b)
    assert jnp.allclose(out_b32, ref_b, atol=1e-5, rtol=1e-5), "case B (f32) mismatch"
    out_b = jax.block_until_ready(projection_head(xb, *pb))
    assert jnp.allclose(out_b, ref_b, atol=5e-2, rtol=5e-2), "case B (bf16) mismatch"

    print("KERNEL_OK")
</pallas_src>

<mosaic_0001>
module attributes {stable_mosaic.version = 11 : i64} {
  func.func @_projection_head_kernel(%arg0: i32, %arg1: memref<8x256xbf16, #tpu.memory_space<vmem>>, %arg2: memref<256x128xbf16, #tpu.memory_space<vmem>>, %arg3: memref<128x128xbf16, #tpu.memory_space<vmem>>, %arg4: memref<4x128xf32, #tpu.memory_space<vmem>>, %arg5: memref<8x128xf32, #tpu.memory_space<vmem>>) attributes {dimension_semantics = [#tpu.dimension_semantics<parallel>], iteration_bounds = array<i64: 1>, scalar_prefetch = 0 : i64, scratch_operands = 0 : i64, tpu.core_type = #tpu.core_type<tc>, window_params = [{transform_indices = @transform_0, window_bounds = array<i64: 8, 256>}, {pipeline_mode = #tpu.pipeline_mode<synchronous>, transform_indices = @transform_1, window_bounds = array<i64: 256, 128>}, {pipeline_mode = #tpu.pipeline_mode<synchronous>, transform_indices = @transform_2, window_bounds = array<i64: 128, 128>}, {pipeline_mode = #tpu.pipeline_mode<synchronous>, transform_indices = @transform_3, window_bounds = array<i64: 4, 128>}, {transform_indices = @transform_4, window_bounds = array<i64: 8, 128>}]} {
    %c0 = arith.constant 0 : index
    %c0_0 = arith.constant 0 : index
    %0 = vector.load %arg4[%c0, %c0_0] : memref<4x128xf32, #tpu.memory_space<vmem>>, vector<4x128xf32>
    %1 = vector.extract_strided_slice %0 {offsets = [0, 0], sizes = [1, 128], strides = [1, 1]} : vector<4x128xf32> to vector<1x128xf32>
    %2 = vector.extract_strided_slice %0 {offsets = [1, 0], sizes = [1, 128], strides = [1, 1]} : vector<4x128xf32> to vector<1x128xf32>
    %3 = vector.extract_strided_slice %0 {offsets = [2, 0], sizes = [1, 128], strides = [1, 1]} : vector<4x128xf32> to vector<1x128xf32>
    %4 = vector.extract_strided_slice %0 {offsets = [3, 0], sizes = [1, 128], strides = [1, 1]} : vector<4x128xf32> to vector<1x128xf32>
    %c0_1 = arith.constant 0 : index
    %c0_2 = arith.constant 0 : index
    %5 = vector.load %arg1[%c0_1, %c0_2] : memref<8x256xbf16, #tpu.memory_space<vmem>>, vector<8x256xbf16>
    %c0_3 = arith.constant 0 : index
    %c0_4 = arith.constant 0 : index
    %6 = vector.load %arg2[%c0_3, %c0_4] : memref<256x128xbf16, #tpu.memory_space<vmem>>, vector<256x128xbf16>
    %cst = arith.constant dense<0.000000e+00> : vector<8x128xf32>
    %7 = tpu.matmul %5, %6, %cst {dimension_numbers = #tpu.dot_dimension_numbers<[1], [0], [0], [1], [0, 0, 1, 1], [], []>} : vector<8x256xbf16>, vector<256x128xbf16>, vector<8x128xf32> -> vector<8x128xf32>
    %8 = vector.broadcast %1 : vector<1x128xf32> to vector<8x128xf32>
    %9 = arith.addf %7, %8 : vector<8x128xf32>
    %cst_5 = arith.constant 5.000000e-01 : f32
    %10 = vector.broadcast %cst_5 : f32 to vector<8x128xf32>
    %11 = arith.mulf %10, %9 : vector<8x128xf32>
    %cst_6 = arith.constant 0.707106769 : f32
    %12 = vector.broadcast %cst_6 : f32 to vector<8x128xf32>
    %13 = arith.mulf %9, %12 : vector<8x128xf32>
    %14 = math.erf %13 : vector<8x128xf32>
    %cst_7 = arith.constant 1.000000e+00 : f32
    %15 = vector.broadcast %cst_7 : f32 to vector<8x128xf32>
    %16 = arith.addf %15, %14 : vector<8x128xf32>
    %17 = arith.mulf %11, %16 : vector<8x128xf32>
    %18 = arith.truncf %17 : vector<8x128xf32> to vector<8x128xbf16>
    %c0_8 = arith.constant 0 : index
    %c0_9 = arith.constant 0 : index
    %19 = vector.load %arg3[%c0_8, %c0_9] : memref<128x128xbf16, #tpu.memory_space<vmem>>, vector<128x128xbf16>
    %cst_10 = arith.constant dense<0.000000e+00> : vector<8x128xf32>
    %20 = tpu.matmul %18, %19, %cst_10 {dimension_numbers = #tpu.dot_dimension_numbers<[1], [0], [0], [1], [0, 0, 1, 1], [], []>} : vector<8x128xbf16>, vector<128x128xbf16>, vector<8x128xf32> -> vector<8x128xf32>
    %21 = vector.broadcast %2 : vector<1x128xf32> to vector<8x128xf32>
    %22 = arith.addf %20, %21 : vector<8x128xf32>
    %23 = arith.addf %22, %9 : vector<8x128xf32>
    %cst_11 = arith.constant dense<0.000000e+00> : vector<8xf32>
    %24 = vector.multi_reduction <add>, %23, %cst_11 [1] : vector<8x128xf32> to vector<8xf32>
    %25 = vector.shape_cast %24 : vector<8xf32> to vector<8x1xf32>
    %26 = arith.mulf %23, %23 : vector<8x128xf32>
    %cst_12 = arith.constant dense<0.000000e+00> : vector<8xf32>
    %27 = vector.multi_reduction <add>, %26, %cst_12 [1] : vector<8x128xf32> to vector<8xf32>
    %28 = vector.shape_cast %27 : vector<8xf32> to vector<8x1xf32>
    %cst_13 = arith.constant 7.812500e-03 : f32
    %29 = vector.broadcast %cst_13 : f32 to vector<8x1xf32>
    %30 = arith.mulf %25, %29 : vector<8x1xf32>
    %cst_14 = arith.constant 7.812500e-03 : f32
    %31 = vector.broadcast %cst_14 : f32 to vector<8x1xf32>
    %32 = arith.mulf %28, %31 : vector<8x1xf32>
    %33 = arith.mulf %30, %30 : vector<8x1xf32>
    %34 = arith.subf %32, %33 : vector<8x1xf32>
    %cst_15 = arith.constant 0.000000e+00 : f32
    %35 = vector.broadcast %cst_15 : f32 to vector<8x1xf32>
    %36 = arith.maximumf %34, %35 : vector<8x1xf32>
    %37 = vector.broadcast %30 : vector<8x1xf32> to vector<8x128xf32>
    %38 = arith.subf %23, %37 : vector<8x128xf32>
    %cst_16 = arith.constant 9.99999974E-6 : f32
    %39 = vector.broadcast %cst_16 : f32 to vector<8x1xf32>
    %40 = arith.addf %36, %39 : vector<8x1xf32>
    %41 = math.rsqrt %40 : vector<8x1xf32>
    %42 = vector.broadcast %41 : vector<8x1xf32> to vector<8x128xf32>
    %43 = arith.mulf %38, %42 : vector<8x128xf32>
    %44 = vector.broadcast %3 : vector<1x128xf32> to vector<8x128xf32>
    %45 = arith.mulf %43, %44 : vector<8x128xf32>
    %46 = vector.broadcast %4 : vector<1x128xf32> to vector<8x128xf32>
    %47 = arith.addf %45, %46 : vector<8x128xf32>
    %c0_17 = arith.constant 0 : index
    %c0_18 = arith.constant 0 : index
    %48 = vector.load %arg5[%c0_17, %c0_18] : memref<8x128xf32, #tpu.memory_space<vmem>>, vector<8x128xf32>
    tpu.vector_store %arg5[%c0_17, %c0_18], %47 {strides = array<i32>} : memref<8x128xf32, #tpu.memory_space<vmem>>, vector<8x128xf32>,
    return
  }
  func.func @transform_0(%arg0: i32) -> (i32, i32) {
    %c0_i32 = arith.constant 0 : i32
    %c0_i32_0 = arith.constant 0 : i32
    return %arg0, %c0_i32 : i32, i32
  }
  func.func @transform_1(%arg0: i32) -> (i32, i32) {
    %c0_i32 = arith.constant 0 : i32
    %c0_i32_0 = arith.constant 0 : i32
    %c0_i32_1 = arith.constant 0 : i32
    return %c0_i32, %c0_i32_0 : i32, i32
  }
  func.func @transform_2(%arg0: i32) -> (i32, i32) {
    %c0_i32 = arith.constant 0 : i32
    %c0_i32_0 = arith.constant 0 : i32
    %c0_i32_1 = arith.constant 0 : i32
    return %c0_i32, %c0_i32_0 : i32, i32
  }
  func.func @transform_3(%arg0: i32) -> (i32, i32) {
    %c0_i32 = arith.constant 0 : i32
    %c0_i32_0 = arith.constant 0 : i32
    %c0_i32_1 = arith.constant 0 : i32
    return %c0_i32, %c0_i32_0 : i32, i32
  }
  func.func @transform_4(%arg0: i32) -> (i32, i32) {
    %c0_i32 = arith.constant 0 : i32
    %c0_i32_0 = arith.constant 0 : i32
    return %arg0, %c0_i32 : i32, i32
  }
}

module attributes {stable_mosaic.version = 11 : i64} {
  func.func @_projection_head_kernel(%arg0: i32, %arg1: memref<8x256xbf16, #tpu.memory_space<vmem>>, %arg2: memref<256x128xbf16, #tpu.memory_space<vmem>>, %arg3: memref<128x128xbf16, #tpu.memory_space<vmem>>, %arg4: memref<4x128xf32, #tpu.memory_space<vmem>>, %arg5: memref<8x128xf32, #tpu.memory_space<vmem>>) attributes {dimension_semantics = [#tpu.dimension_semantics<parallel>], iteration_bounds = array<i64: 1>, scalar_prefetch = 0 : i64, scratch_operands = 0 : i64, tpu.core_type = #tpu.core_type<tc>, window_params = [{transform_indices = @transform_0, window_bounds = array<i64: 8, 256>}, {pipeline_mode = #tpu.pipeline_mode<synchronous>, transform_indices = @transform_1, window_bounds = array<i64: 256, 128>}, {pipeline_mode = #tpu.pipeline_mode<synchronous>, transform_indices = @transform_2, window_bounds = array<i64: 128, 128>}, {pipeline_mode = #tpu.pipeline_mode<synchronous>, transform_indices = @transform_3, window_bounds = array<i64: 4, 128>}, {transform_indices = @transform_4, window_bounds = array<i64: 8, 128>}]} {
    %c0 = arith.constant 0 : index
    %c0_0 = arith.constant 0 : index
    %0 = vector.load %arg4[%c0, %c0_0] : memref<4x128xf32, #tpu.memory_space<vmem>>, vector<4x128xf32>
    %1 = vector.extract_strided_slice %0 {offsets = [0, 0], sizes = [1, 128], strides = [1, 1]} : vector<4x128xf32> to vector<1x128xf32>
    %2 = vector.extract_strided_slice %0 {offsets = [1, 0], sizes = [1, 128], strides = [1, 1]} : vector<4x128xf32> to vector<1x128xf32>
    %3 = vector.extract_strided_slice %0 {offsets = [2, 0], sizes = [1, 128], strides = [1, 1]} : vector<4x128xf32> to vector<1x128xf32>
    %4 = vector.extract_strided_slice %0 {offsets = [3, 0], sizes = [1, 128], strides = [1, 1]} : vector<4x128xf32> to vector<1x128xf32>
    %c0_1 = arith.constant 0 : index
    %c0_2 = arith.constant 0 : index
    %5 = vector.load %arg1[%c0_1, %c0_2] : memref<8x256xbf16, #tpu.memory_space<vmem>>, vector<8x256xbf16>
    %c0_3 = arith.constant 0 : index
    %c0_4 = arith.constant 0 : index
    %6 = vector.load %arg2[%c0_3, %c0_4] : memref<256x128xbf16, #tpu.memory_space<vmem>>, vector<256x128xbf16>
    %cst = arith.constant dense<0.000000e+00> : vector<8x128xf32>
    %7 = tpu.matmul %5, %6, %cst {dimension_numbers = #tpu.dot_dimension_numbers<[1], [0], [0], [1], [0, 0, 1, 1], [], []>} : vector<8x256xbf16>, vector<256x128xbf16>, vector<8x128xf32> -> vector<8x128xf32>
    %8 = vector.broadcast %1 : vector<1x128xf32> to vector<8x128xf32>
    %9 = arith.addf %7, %8 : vector<8x128xf32>
    %cst_5 = arith.constant 5.000000e-01 : f32
    %10 = vector.broadcast %cst_5 : f32 to vector<8x128xf32>
    %11 = arith.mulf %10, %9 : vector<8x128xf32>
    %cst_6 = arith.constant 0.707106769 : f32
    %12 = vector.broadcast %cst_6 : f32 to vector<8x128xf32>
    %13 = arith.mulf %9, %12 : vector<8x128xf32>
    %14 = math.erf %13 : vector<8x128xf32>
    %cst_7 = arith.constant 1.000000e+00 : f32
    %15 = vector.broadcast %cst_7 : f32 to vector<8x128xf32>
    %16 = arith.addf %15, %14 : vector<8x128xf32>
    %17 = arith.mulf %11, %16 : vector<8x128xf32>
    %18 = arith.truncf %17 : vector<8x128xf32> to vector<8x128xbf16>
    %c0_8 = arith.constant 0 : index
    %c0_9 = arith.constant 0 : index
    %19 = vector.load %arg3[%c0_8, %c0_9] : memref<128x128xbf16, #tpu.memory_space<vmem>>, vector<128x128xbf16>
    %cst_10 = arith.constant dense<0.000000e+00> : vector<8x128xf32>
    %20 = tpu.matmul %18, %19, %cst_10 {dimension_numbers = #tpu.dot_dimension_numbers<[1], [0], [0], [1], [0, 0, 1, 1], [], []>} : vector<8x128xbf16>, vector<128x128xbf16>, vector<8x128xf32> -> vector<8x128xf32>
    %21 = vector.broadcast %2 : vector<1x128xf32> to vector<8x128xf32>
    %22 = arith.addf %20, %21 : vector<8x128xf32>
    %23 = arith.addf %22, %9 : vector<8x128xf32>
    %cst_11 = arith.constant dense<0.000000e+00> : vector<8xf32>
    %24 = vector.multi_reduction <add>, %23, %cst_11 [1] : vector<8x128xf32> to vector<8xf32>
    %25 = vector.shape_cast %24 : vector<8xf32> to vector<8x1xf32>
    %26 = arith.mulf %23, %23 : vector<8x128xf32>
    %cst_12 = arith.constant dense<0.000000e+00> : vector<8xf32>
    %27 = vector.multi_reduction <add>, %26, %cst_12 [1] : vector<8x128xf32> to vector<8xf32>
    %28 = vector.shape_cast %27 : vector<8xf32> to vector<8x1xf32>
    %cst_13 = arith.constant 7.812500e-03 : f32
    %29 = vector.broadcast %cst_13 : f32 to vector<8x1xf32>
    %30 = arith.mulf %25, %29 : vector<8x1xf32>
    %cst_14 = arith.constant 7.812500e-03 : f32
    %31 = vector.broadcast %cst_14 : f32 to vector<8x1xf32>
    %32 = arith.mulf %28, %31 : vector<8x1xf32>
    %33 = arith.mulf %30, %30 : vector<8x1xf32>
    %34 = arith.subf %32, %33 : vector<8x1xf32>
    %cst_15 = arith.constant 0.000000e+00 : f32
    %35 = vector.broadcast %cst_15 : f32 to vector<8x1xf32>
    %36 = arith.maximumf %34, %35 : vector<8x1xf32>
    %37 = vector.broadcast %30 : vector<8x1xf32> to vector<8x128xf32>
    %38 = arith.subf %23, %37 : vector<8x128xf32>
    %cst_16 = arith.constant 9.99999974E-6 : f32
    %39 = vector.broadcast %cst_16 : f32 to vector<8x1xf32>
    %40 = arith.addf %36, %39 : vector<8x1xf32>
    %41 = math.rsqrt %40 : vector<8x1xf32>
    %42 = vector.broadcast %41 : vector<8x1xf32> to vector<8x128xf32>
    %43 = arith.mulf %38, %42 : vector<8x128xf32>
    %44 = vector.broadcast %3 : vector<1x128xf32> to vector<8x128xf32>
    %45 = arith.mulf %43, %44 : vector<8x128xf32>
    %46 = vector.broadcast %4 : vector<1x128xf32> to vector<8x128xf32>
    %47 = arith.addf %45, %46 : vector<8x128xf32>
    %c0_17 = arith.constant 0 : index
    %c0_18 = arith.constant 0 : index
    %48 = vector.load %arg5[%c0_17, %c0_18] : memref<8x128xf32, #tpu.memory_space<vmem>>, vector<8x128xf32>
    tpu.vector_store %arg5[%c0_17, %c0_18], %47 {strides = array<i32>} : memref<8x128xf32, #tpu.memory_space<vmem>>, vector<8x128xf32>,
    return
  }
  func.func @transform_0(%arg0: i32) -> (i32, i32) {
    %c0_i32 = arith.constant 0 : i32
    %c0_i32_0 = arith.constant 0 : i32
    return %arg0, %c0_i32 : i32, i32
  }
  func.func @transform_1(%arg0: i32) -> (i32, i32) {
    %c0_i32 = arith.constant 0 : i32
    %c0_i32_0 = arith.constant 0 : i32
    %c0_i32_1 = arith.constant 0 : i32
    return %c0_i32, %c0_i32_0 : i32, i32
  }
  func.func @transform_2(%arg0: i32) -> (i32, i32) {
    %c0_i32 = arith.constant 0 : i32
    %c0_i32_0 = arith.constant 0 : i32
    %c0_i32_1 = arith.constant 0 : i32
    return %c0_i32, %c0_i32_0 : i32, i32
  }
  func.func @transform_3(%arg0: i32) -> (i32, i32) {
    %c0_i32 = arith.constant 0 : i32
    %c0_i32_0 = arith.constant 0 : i32
    %c0_i32_1 = arith.constant 0 : i32
    return %c0_i32, %c0_i32_0 : i32, i32
  }
  func.func @transform_4(%arg0: i32) -> (i32, i32) {
    %c0_i32 = arith.constant 0 : i32
    %c0_i32_0 = arith.constant 0 : i32
    return %arg0, %c0_i32 : i32, i32
  }
}

</mosaic_0001>

<llo_original>
// kernel: tpu_custom_call.1
$region0: #{tpu_custom_call.1}
  #allocation0 [shape = 'u32[]', space=smem, size = 0x4, offset = 0x4, fixed_abs, tag = 'smem constant byte address 0x4 - core index']
  #allocation1 [shape = 'u32[144,128]{1,0:T(1,128)}', space=vmem, size = 0x12000, scoped, tag = 'internal scratch']
  %s0 = inlined_call_operand.hbm [shape: bf16[8,256], index: 0, kind: input, shape index: {}]
  %s1 = inlined_call_operand.hbm [shape: bf16[256,128], index: 1, kind: input, shape index: {}]
  %s2 = inlined_call_operand.hbm [shape: bf16[128,128], index: 2, kind: input, shape index: {}]
  %s3 = inlined_call_operand.vmem [shape: f32[4,128], index: 3, kind: input, shape index: {}]
  %s4 = inlined_call_operand.hbm [shape: f32[8,128], index: 4, kind: output, shape index: {}]
  %s5 = sld [smem:[#allocation0]]
  $region38: #{tpu_custom_call.1} parent=0
    _
  %s7 = ssub.s32 1, %s5
  %s8 = scalar_select 0, %s7, %s5
  $region1: #{tpu_custom_call.1} parent=0
    #allocation2 [shape = 'u8[4096]{0}', space=vmem, size = 0x1000, scoped, tag = 'input window, operand 0, single buffered']
    #allocation3 [shape = 's32[1]{0}', space=sflag, size = 0x4, scoped, tag = 'scoped memory for tpu_custom_call.1']
    #allocation4 [shape = 's32[1]{0}', space=sflag, size = 0x4, scoped, tag = 'scoped memory for tpu_custom_call.1']
    #allocation5 [shape = 'u8[65536]{0}', space=vmem, size = 0x10000, scoped, tag = 'input window, operand 1, single buffered']
    #allocation6 [shape = 's32[1]{0}', space=sflag, size = 0x4, scoped, tag = 'scoped memory for tpu_custom_call.1']
    #allocation7 [shape = 'u8[32768]{0}', space=vmem, size = 0x8000, scoped, tag = 'input window, operand 2, single buffered']
    #allocation8 [shape = 'u8[4096]{0}', space=vmem, size = 0x1000, scoped, tag = 'output window, operand 0, single buffered']
    %9 = vsyncpa [#allocation3], 0
    %10 = vsyncpa [#allocation6], 0
    %11 = vsyncpa [#allocation4], 0
    // Predicated region
    $region2: #{tpu_custom_call.1} parent=1 // pred_check
      _
    $region3: #{tpu_custom_call.1} parent=1 // pred_check_branch
      %13 = sbr.rel (0) target = $region5
    $region4: #{tpu_custom_call.1} parent=1 // pred_region
      %s15 = ssub.s32 128, 128
      %16 = vsyncadd [#allocation3], %s15
      %s18 = sshll.u32 [#allocation2], 4
      %s19 = int_to_ptr.vmem [resolvable:$true] %s18
      %21 = dma.hbm_to_vmem [thread:$0]  %s0, 128, %s19, [#allocation3]
    $region5: #{tpu_custom_call.1} parent=1 // pred_fallthru
      _
    // Predicated region
    $region6: #{tpu_custom_call.1} parent=1 // pred_check
      _
    $region7: #{tpu_custom_call.1} parent=1 // pred_check_branch
      %23 = sbr.rel (0) target = $region9
    $region8: #{tpu_custom_call.1} parent=1 // pred_region
      %s25 = ssub.s32 2048, 2048
      %26 = vsyncadd [#allocation6], %s25
      %s27 = sshll.u32 [#allocation5], 4
      %s28 = int_to_ptr.vmem [resolvable:$true] %s27
      %33 = dma.hbm_to_vmem [thread:$0]  %s1, 2048, %s28, [#allocation6], 64, 64, 4
    $region9: #{tpu_custom_call.1} parent=1 // pred_fallthru
      _
    // Predicated region
    $region10: #{tpu_custom_call.1} parent=1 // pred_check
      _
    $region11: #{tpu_custom_call.1} parent=1 // pred_check_branch
      %35 = sbr.rel (0) target = $region13
    $region12: #{tpu_custom_call.1} parent=1 // pred_region
      %s37 = ssub.s32 1024, 1024
      %38 = vsyncadd [#allocation6], %s37
      %s39 = sshll.u32 [#allocation7], 4
      %s40 = int_to_ptr.vmem [resolvable:$true] %s39
      %45 = dma.hbm_to_vmem [thread:$0]  %s2, 1024, %s40, [#allocation6], 64, 64, 4
    $region13: #{tpu_custom_call.1} parent=1 // pred_fallthru
      _
    // Predicated region
    $region14: #{tpu_custom_call.1} parent=1 // pred_check
      _
    $region15: #{tpu_custom_call.1} parent=1 // pred_check_branch
      %47 = sbr.rel (0) target = $region17
    $region16: #{tpu_custom_call.1} parent=1 // pred_region
      _
    $region17: #{tpu_custom_call.1} parent=1 // pred_fallthru
      _
    // Predicated region
    $region18: #{tpu_custom_call.1} parent=1 // pred_check
      _
    $region19: #{tpu_custom_call.1} parent=1 // pred_check_branch
      %49 = sbr.rel (0) target = $region21
    $region20: #{tpu_custom_call.1} parent=1 // pred_region
      %50 = dma.done [#allocation3], 128
    $region21: #{tpu_custom_call.1} parent=1 // pred_fallthru
      _
    // Predicated region
    $region22: #{tpu_custom_call.1} parent=1 // pred_check
      _
    $region23: #{tpu_custom_call.1} parent=1 // pred_check_branch
      %52 = sbr.rel (0) target = $region25
    $region24: #{tpu_custom_call.1} parent=1 // pred_region
      %53 = dma.done [#allocation6], 2048
    $region25: #{tpu_custom_call.1} parent=1 // pred_fallthru
      _
    // Predicated region
    $region26: #{tpu_custom_call.1} parent=1 // pred_check
      _
    $region27: #{tpu_custom_call.1} parent=1 // pred_check_branch
      %55 = sbr.rel (0) target = $region29
    $region28: #{tpu_custom_call.1} parent=1 // pred_region
      %56 = dma.done [#allocation6], 1024
    $region29: #{tpu_custom_call.1} parent=1 // pred_fallthru
      _
    %v58 = vld [vmem:[%s3] sm:$0xf]
    %v59 = vld [vmem:[#allocation2] sm:$0xff]
    %v60 = vld [vmem:[#allocation5] sm:$0xf]
    %v61 = vld [vmem:[#allocation5 + $0x4] sm:$0xf]
    %v62 = vld [vmem:[#allocation5 + $0x8] sm:$0xf]
    %v63 = vld [vmem:[#allocation5 + $0xc] sm:$0xf]
    %v64 = vld [vmem:[#allocation5 + $0x10] sm:$0xf]
    %v65 = vld [vmem:[#allocation5 + $0x14] sm:$0xf]
    %v66 = vld [vmem:[#allocation5 + $0x18] sm:$0xf]
    %v67 = vld [vmem:[#allocation5 + $0x1c] sm:$0xf]
    %v68 = vld [vmem:[#allocation5 + $0x20] sm:$0xf]
    %v69 = vld [vmem:[#allocation5 + $0x24] sm:$0xf]
    %v70 = vld [vmem:[#allocation5 + $0x28] sm:$0xf]
    %v71 = vld [vmem:[#allocation5 + $0x2c] sm:$0xf]
    %v72 = vld [vmem:[#allocation5 + $0x30] sm:$0xf]
    %v73 = vld [vmem:[#allocation5 + $0x34] sm:$0xf]
    %v74 = vld [vmem:[#allocation5 + $0x38] sm:$0xf]
    %v75 = vld [vmem:[#allocation5 + $0x3c] sm:$0xf]
    %v76 = vld [vmem:[#allocation5 + $0x40] sm:$0xf]
    %v77 = vld [vmem:[#allocation5 + $0x44] sm:$0xf]
    %v78 = vld [vmem:[#allocation5 + $0x48] sm:$0xf]
    %v79 = vld [vmem:[#allocation5 + $0x4c] sm:$0xf]
    %v80 = vld [vmem:[#allocation5 + $0x50] sm:$0xf]
    %v81 = vld [vmem:[#allocation5 + $0x54] sm:$0xf]
    %v82 = vld [vmem:[#allocation5 + $0x58] sm:$0xf]
    %v83 = vld [vmem:[#allocation5 + $0x5c] sm:$0xf]
    %v84 = vld [vmem:[#allocation5 + $0x60] sm:$0xf]
    %v85 = vld [vmem:[#allocation5 + $0x64] sm:$0xf]
    %v86 = vld [vmem:[#allocation5 + $0x68] sm:$0xf]
    %v87 = vld [vmem:[#allocation5 + $0x6c] sm:$0xf]
    %v88 = vld [vmem:[#allocation5 + $0x70] sm:$0xf]
    %v89 = vld [vmem:[#allocation5 + $0x74] sm:$0xf]
    %v90 = vld [vmem:[#allocation5 + $0x78] sm:$0xf]
    %v91 = vld [vmem:[#allocation5 + $0x7c] sm:$0xf]
    %v92 = vlaneseq
    %v93 = vshrl.u32 %v92, 7
    %v94 = vsub.s32 0, %v93
    %v95 = vrot.slane %v58, %v94
    %v97 = vunpack.c.l.b16 %v59
    %v98 = vunpack.c.h.b16 %v59
    %v99 = vpack.c.b16 %v97, %v97
    %v100 = vpack.c.b16 %v98, %v98
    %v135 = vunpack.c.l.b16 %v60
    %v136 = vunpack.c.l.b16 %v61
    %v137 = vunpack.c.l.b16 %v62
    %v138 = vunpack.c.l.b16 %v63
    %v139 = vunpack.c.l.b16 %v64
    %v140 = vunpack.c.l.b16 %v65
    %v141 = vunpack.c.l.b16 %v66
    %v142 = vunpack.c.l.b16 %v67
    %v143 = vunpack.c.l.b16 %v68
    %v144 = vunpack.c.l.b16 %v69
    %v145 = vunpack.c.l.b16 %v70
    %v146 = vunpack.c.l.b16 %v71
    %v147 = vunpack.c.l.b16 %v72
    %v148 = vunpack.c.l.b16 %v73
    %v149 = vunpack.c.l.b16 %v74
    %v150 = vunpack.c.l.b16 %v75
    %v151 = vunpack.c.l.b16 %v76
    %v152 = vunpack.c.l.b16 %v77
    %v153 = vunpack.c.l.b16 %v78
    %v154 = vunpack.c.l.b16 %v79
    %v155 = vunpack.c.l.b16 %v80
    %v156 = vunpack.c.l.b16 %v81
    %v157 = vunpack.c.l.b16 %v82
    %v158 = vunpack.c.l.b16 %v83
    %v159 = vunpack.c.l.b16 %v84
    %v160 = vunpack.c.l.b16 %v85
    %v161 = vunpack.c.l.b16 %v86
    %v162 = vunpack.c.l.b16 %v87
    %v163 = vunpack.c.l.b16 %v88
    %v164 = vunpack.c.l.b16 %v89
    %v165 = vunpack.c.l.b16 %v90
    %v166 = vunpack.c.l.b16 %v91
    %v167 = vpack.c.b16 %v136, %v135
    %v168 = vpack.c.b16 %v138, %v137
    %v169 = vpack.c.b16 %v140, %v139
    %v170 = vpack.c.b16 %v142, %v141
    %v171 = vpack.c.b16 %v144, %v143
    %v172 = vpack.c.b16 %v146, %v145
    %v173 = vpack.c.b16 %v148, %v147
    %v174 = vpack.c.b16 %v150, %v149
    %v175 = vpack.c.b16 %v152, %v151
    %v176 = vpack.c.b16 %v154, %v153
    %v177 = vpack.c.b16 %v156, %v155
    %v178 = vpack.c.b16 %v158, %v157
    %v179 = vpack.c.b16 %v160, %v159
    %v180 = vpack.c.b16 %v162, %v161
    %v181 = vpack.c.b16 %v164, %v163
    %v182 = vpack.c.b16 %v166, %v165
    %199 = vmatprep.subr.bf16.mxu0 0
    %200 = vmatpush1.bf16.msra.mxu0 %v167
    %201 = vmatprep.subr.bf16.mxu0 0
    %202 = vmatpush1.bf16.msra.mxu0 %v168
    %203 = vmatprep.subr.bf16.mxu0 0
    %204 = vmatpush1.bf16.msra.mxu0 %v169
    %205 = vmatprep.subr.bf16.mxu0 0
    %206 = vmatpush1.bf16.msra.mxu0 %v170
    %207 = vmatprep.subr.bf16.mxu0 0
    %208 = vmatpush1.bf16.msra.mxu0 %v171
    %209 = vmatprep.subr.bf16.mxu0 0
    %210 = vmatpush1.bf16.msra.mxu0 %v172
    %211 = vmatprep.subr.bf16.mxu0 0
    %212 = vmatpush1.bf16.msra.mxu0 %v173
    %213 = vmatprep.subr.bf16.mxu0 0
    %214 = vmatpush1.bf16.msra.mxu0 %v174
    %215 = vmatprep.subr.bf16.mxu0 0
    %216 = vmatpush1.bf16.msra.mxu0 %v175
    %217 = vmatprep.subr.bf16.mxu0 0
    %218 = vmatpush1.bf16.msra.mxu0 %v176
    %219 = vmatprep.subr.bf16.mxu0 0
    %220 = vmatpush1.bf16.msra.mxu0 %v177
    %221 = vmatprep.subr.bf16.mxu0 0
    %222 = vmatpush1.bf16.msra.mxu0 %v178
    %223 = vmatprep.subr.bf16.mxu0 0
    %224 = vmatpush1.bf16.msra.mxu0 %v179
    %225 = vmatprep.subr.bf16.mxu0 0
    %226 = vmatpush1.bf16.msra.mxu0 %v180
    %227 = vmatprep.subr.bf16.mxu0 0
    %228 = vmatpush1.bf16.msra.mxu0 %v181
    %229 = vmatprep.subr.bf16.mxu0 0
    %230 = vmatpush1.bf16.msra.mxu0 %v182
    %231 = vmatprep.mubr.bf16.mxu0 %v100
    %232 = vmatmul.mubr.bf16.gmra.mrb[0].mxu0 %v99
    %v233 = vpop.f32.mrb[0].mxu0
    %v234 = vadd.f32 %v95, %v233
    %v235 = vpop.f32.mrb[0].mxu0
    %v236 = vpop.f32.mrb[0].mxu0
    %v237 = vpop.f32.mrb[0].mxu0
    %238 = vdwg.mxu0
    %v239 = vmul.f32 %v234, 0.5
    %v240 = vmul.f32 %v234, 0.70710677
    %v241 = verf.f32.pop %v240
    %v242 = vadd.f32 %v241, 1.0
    %v243 = vmul.f32 %v239, %v242
    %v244 = vpack.c.bf16 %v243, %v243
    %v245 = vld [vmem:[#allocation7] sm:$0xf]
    %v246 = vld [vmem:[#allocation7 + $0x4] sm:$0xf]
    %v247 = vld [vmem:[#allocation7 + $0x8] sm:$0xf]
    %v248 = vld [vmem:[#allocation7 + $0xc] sm:$0xf]
    %v249 = vld [vmem:[#allocation7 + $0x10] sm:$0xf]
    %v250 = vld [vmem:[#allocation7 + $0x14] sm:$0xf]
    %v251 = vld [vmem:[#allocation7 + $0x18] sm:$0xf]
    %v252 = vld [vmem:[#allocation7 + $0x1c] sm:$0xf]
    %v253 = vld [vmem:[#allocation7 + $0x20] sm:$0xf]
    %v254 = vld [vmem:[#allocation7 + $0x24] sm:$0xf]
    %v255 = vld [vmem:[#allocation7 + $0x28] sm:$0xf]
    %v256 = vld [vmem:[#allocation7 + $0x2c] sm:$0xf]
    %v257 = vld [vmem:[#allocation7 + $0x30] sm:$0xf]
    %v258 = vld [vmem:[#allocation7 + $0x34] sm:$0xf]
    %v259 = vld [vmem:[#allocation7 + $0x38] sm:$0xf]
    %v260 = vld [vmem:[#allocation7 + $0x3c] sm:$0xf]
    %v261 = vlaneseq
    %v262 = vshrl.u32 %v261, 7
    %v263 = vsub.s32 1, %v262
    %v264 = vrot.slane %v58, %v263
    %v281 = vunpack.c.l.b16 %v245
    %v282 = vunpack.c.l.b16 %v246
    %v283 = vunpack.c.l.b16 %v247
    %v284 = vunpack.c.l.b16 %v248
    %v285 = vunpack.c.l.b16 %v249
    %v286 = vunpack.c.l.b16 %v250
    %v287 = vunpack.c.l.b16 %v251
    %v288 = vunpack.c.l.b16 %v252
    %v289 = vunpack.c.l.b16 %v253
    %v290 = vunpack.c.l.b16 %v254
    %v291 = vunpack.c.l.b16 %v255
    %v292 = vunpack.c.l.b16 %v256
    %v293 = vunpack.c.l.b16 %v257
    %v294 = vunpack.c.l.b16 %v258
    %v295 = vunpack.c.l.b16 %v259
    %v296 = vunpack.c.l.b16 %v260
    %v297 = vpack.c.b16 %v282, %v281
    %v298 = vpack.c.b16 %v284, %v283
    %v299 = vpack.c.b16 %v286, %v285
    %v300 = vpack.c.b16 %v288, %v287
    %v301 = vpack.c.b16 %v290, %v289
    %v302 = vpack.c.b16 %v292, %v291
    %v303 = vpack.c.b16 %v294, %v293
    %v304 = vpack.c.b16 %v296, %v295
    %313 = vmatprep.subr.bf16.mxu0 0
    %314 = vmatpush1.bf16.msra.mxu0 %v297
    %315 = vmatprep.subr.bf16.mxu0 0
    %316 = vmatpush1.bf16.msra.mxu0 %v298
    %317 = vmatprep.subr.bf16.mxu0 0
    %318 = vmatpush1.bf16.msra.mxu0 %v299
    %319 = vmatprep.subr.bf16.mxu0 0
    %320 = vmatpush1.bf16.msra.mxu0 %v300
    %321 = vmatprep.subr.bf16.mxu0 0
    %322 = vmatpush1.bf16.msra.mxu0 %v301
    %323 = vmatprep.subr.bf16.mxu0 0
    %324 = vmatpush1.bf16.msra.mxu0 %v302
    %325 = vmatprep.subr.bf16.mxu0 0
    %326 = vmatpush1.bf16.msra.mxu0 %v303
    %327 = vmatprep.subr.bf16.mxu0 0
    %328 = vmatpush1.bf16.msra.mxu0 %v304
    %329 = vmatprep.subr.bf16.mxu0 0
    %330 = vmatpush1.bf16.msra.mxu0 0
    %331 = vmatprep.subr.bf16.mxu0 0
    %332 = vmatpush1.bf16.msra.mxu0 0
    %333 = vmatprep.subr.bf16.mxu0 0
    %334 = vmatpush1.bf16.msra.mxu0 0
    %335 = vmatprep.subr.bf16.mxu0 0
    %336 = vmatpush1.bf16.msra.mxu0 0
    %337 = vmatprep.subr.bf16.mxu0 0
    %338 = vmatpush1.bf16.msra.mxu0 0
    %339 = vmatprep.subr.bf16.mxu0 0
    %340 = vmatpush1.bf16.msra.mxu0 0
    %341 = vmatprep.subr.bf16.mxu0 0
    %342 = vmatpush1.bf16.msra.mxu0 0
    %343 = vmatprep.subr.bf16.mxu0 0
    %344 = vmatpush1.bf16.msra.mxu0 0
    %345 = vmatprep.mubr.bf16.mxu0 0
    %346 = vmatmul.mubr.bf16.gmra.mrb[0].mxu0 %v244
    %v347 = vpop.f32.mrb[0].mxu0
    %v348 = vadd.f32 %v264, %v347
    %v349 = vpop.f32.mrb[0].mxu0
    %v350 = vpop.f32.mrb[0].mxu0
    %v351 = vpop.f32.mrb[0].mxu0
    %352 = vdwg.mxu0
    %v353 = vadd.f32 %v348, %v234
    %354 = vadd.xlane.f32.xlu0 %v353
    %v355 = vpop.xlane.xlu0 %354
    %v356 = vmul.f32 %v353, %v353
    %357 = vadd.xlane.f32.xlu0 %v356
    %v358 = vpop.xlane.xlu0 %357
    %v359 = vmul.f32 %v355, 0.0078125
    %v360 = vmul.f32 %v358, 0.0078125
    %v361 = vmul.f32 %v359, %v359
    %v362 = vsub.f32 %v360, %v361
    %v363 = vmax.f32 %v362, 0.0
    %v364 = vsub.f32 %v353, %v359
    %v365 = vadd.f32 %v363, 1e-05
    %v366 = vrsqrt.pop %v365
    %v367 = vmul.f32 %v364, %v366
    %v368 = vlaneseq
    %v369 = vshrl.u32 %v368, 7
    %v370 = vsub.s32 2, %v369
    %v371 = vrot.slane %v58, %v370
    %v372 = vmul.f32 %v367, %v371
    %v373 = vlaneseq
    %v374 = vshrl.u32 %v373, 7
    %v375 = vsub.s32 3, %v374
    %v376 = vrot.slane %v58, %v375
    %v377 = vadd.f32 %v372, %v376
    %378 = vst [vmem:[#allocation8] sm:$0xff] %v377
    // Predicated region
    $region30: #{tpu_custom_call.1} parent=1 // pred_check
      _
    $region31: #{tpu_custom_call.1} parent=1 // pred_check_branch
      %380 = sbr.rel (0) target = $region33
    $region32: #{tpu_custom_call.1} parent=1 // pred_region
      %s382 = ssub.s32 128, 128
      %383 = vsyncadd [#allocation4], %s382
      %s385 = sshll.u32 [#allocation8], 4
      %s386 = int_to_ptr.vmem [resolvable:$true] %s385
      %388 = dma.vmem_to_hbm [thread:$0]  %s386, 128, %s4, [#allocation4]
    $region33: #{tpu_custom_call.1} parent=1 // pred_fallthru
      _
    // Predicated region
    $region34: #{tpu_custom_call.1} parent=1 // pred_check
      _
    $region35: #{tpu_custom_call.1} parent=1 // pred_check_branch
      %390 = sbr.rel (0) target = $region37
    $region36: #{tpu_custom_call.1} parent=1 // pred_region
      %391 = dma.done [#allocation4], 128
    $region37: #{tpu_custom_call.1} parent=1 // pred_fallthru
      _
    %392 = vsyncpa [#allocation3], 1
    %393 = vsyncpa [#allocation6], 1
    %394 = vsyncpa [#allocation4], 1

// kernel: tpu_custom_call.1
$region0: #{tpu_custom_call.1}
  #allocation0 [shape = 'u32[]', space=smem, size = 0x4, offset = 0x4, fixed_abs, tag = 'smem constant byte address 0x4 - core index']
  #allocation1 [shape = 'u32[144,128]{1,0:T(1,128)}', space=vmem, size = 0x12000, scoped, tag = 'internal scratch']
  %s0 = inlined_call_operand.hbm [shape: bf16[8,256], index: 0, kind: input, shape index: {}]
  %s1 = inlined_call_operand.hbm [shape: bf16[256,128], index: 1, kind: input, shape index: {}]
  %s2 = inlined_call_operand.hbm [shape: bf16[128,128], index: 2, kind: input, shape index: {}]
  %s3 = inlined_call_operand.vmem [shape: f32[4,128], index: 3, kind: input, shape index: {}]
  %s4 = inlined_call_operand.hbm [shape: f32[8,128], index: 4, kind: output, shape index: {}]
  %s5 = sld [smem:[#allocation0]]
  $region38: #{tpu_custom_call.1} parent=0
    _
  %s7 = ssub.s32 1, %s5
  %s8 = scalar_select 0, %s7, %s5
  $region1: #{tpu_custom_call.1} parent=0
    #allocation2 [shape = 'u8[4096]{0}', space=vmem, size = 0x1000, scoped, tag = 'input window, operand 0, single buffered']
    #allocation3 [shape = 's32[1]{0}', space=sflag, size = 0x4, scoped, tag = 'scoped memory for tpu_custom_call.1']
    #allocation4 [shape = 's32[1]{0}', space=sflag, size = 0x4, scoped, tag = 'scoped memory for tpu_custom_call.1']
    #allocation5 [shape = 'u8[65536]{0}', space=vmem, size = 0x10000, scoped, tag = 'input window, operand 1, single buffered']
    #allocation6 [shape = 's32[1]{0}', space=sflag, size = 0x4, scoped, tag = 'scoped memory for tpu_custom_call.1']
    #allocation7 [shape = 'u8[32768]{0}', space=vmem, size = 0x8000, scoped, tag = 'input window, operand 2, single buffered']
    #allocation8 [shape = 'u8[4096]{0}', space=vmem, size = 0x1000, scoped, tag = 'output window, operand 0, single buffered']
    %9 = vsyncpa [#allocation3], 0
    %10 = vsyncpa [#allocation6], 0
    %11 = vsyncpa [#allocation4], 0
    // Predicated region
    $region2: #{tpu_custom_call.1} parent=1 // pred_check
      _
    $region3: #{tpu_custom_call.1} parent=1 // pred_check_branch
      %13 = sbr.rel (0) target = $region5
    $region4: #{tpu_custom_call.1} parent=1 // pred_region
      %s15 = ssub.s32 128, 128
      %16 = vsyncadd [#allocation3], %s15
      %s18 = sshll.u32 [#allocation2], 4
      %s19 = int_to_ptr.vmem [resolvable:$true] %s18
      %21 = dma.hbm_to_vmem [thread:$0]  %s0, 128, %s19, [#allocation3]
    $region5: #{tpu_custom_call.1} parent=1 // pred_fallthru
      _
    // Predicated region
    $region6: #{tpu_custom_call.1} parent=1 // pred_check
      _
    $region7: #{tpu_custom_call.1} parent=1 // pred_check_branch
      %23 = sbr.rel (0) target = $region9
    $region8: #{tpu_custom_call.1} parent=1 // pred_region
      %s25 = ssub.s32 2048, 2048
      %26 = vsyncadd [#allocation6], %s25
      %s27 = sshll.u32 [#allocation5], 4
      %s28 = int_to_ptr.vmem [resolvable:$true] %s27
      %33 = dma.hbm_to_vmem [thread:$0]  %s1, 2048, %s28, [#allocation6], 64, 64, 4
    $region9: #{tpu_custom_call.1} parent=1 // pred_fallthru
      _
    // Predicated region
    $region10: #{tpu_custom_call.1} parent=1 // pred_check
      _
    $region11: #{tpu_custom_call.1} parent=1 // pred_check_branch
      %35 = sbr.rel (0) target = $region13
    $region12: #{tpu_custom_call.1} parent=1 // pred_region
      %s37 = ssub.s32 1024, 1024
      %38 = vsyncadd [#allocation6], %s37
      %s39 = sshll.u32 [#allocation7], 4
      %s40 = int_to_ptr.vmem [resolvable:$true] %s39
      %45 = dma.hbm_to_vmem [thread:$0]  %s2, 1024, %s40, [#allocation6], 64, 64, 4
    $region13: #{tpu_custom_call.1} parent=1 // pred_fallthru
      _
    // Predicated region
    $region14: #{tpu_custom_call.1} parent=1 // pred_check
      _
    $region15: #{tpu_custom_call.1} parent=1 // pred_check_branch
      %47 = sbr.rel (0) target = $region17
    $region16: #{tpu_custom_call.1} parent=1 // pred_region
      _
    $region17: #{tpu_custom_call.1} parent=1 // pred_fallthru
      _
    // Predicated region
    $region18: #{tpu_custom_call.1} parent=1 // pred_check
      _
    $region19: #{tpu_custom_call.1} parent=1 // pred_check_branch
      %49 = sbr.rel (0) target = $region21
    $region20: #{tpu_custom_call.1} parent=1 // pred_region
      %50 = dma.done [#allocation3], 128
    $region21: #{tpu_custom_call.1} parent=1 // pred_fallthru
      _
    // Predicated region
    $region22: #{tpu_custom_call.1} parent=1 // pred_check
      _
    $region23: #{tpu_custom_call.1} parent=1 // pred_check_branch
      %52 = sbr.rel (0) target = $region25
    $region24: #{tpu_custom_call.1} parent=1 // pred_region
      %53 = dma.done [#allocation6], 2048
    $region25: #{tpu_custom_call.1} parent=1 // pred_fallthru
      _
    // Predicated region
    $region26: #{tpu_custom_call.1} parent=1 // pred_check
      _
    $region27: #{tpu_custom_call.1} parent=1 // pred_check_branch
      %55 = sbr.rel (0) target = $region29
    $region28: #{tpu_custom_call.1} parent=1 // pred_region
      %56 = dma.done [#allocation6], 1024
    $region29: #{tpu_custom_call.1} parent=1 // pred_fallthru
      _
    %v58 = vld [vmem:[%s3] sm:$0xf]
    %v59 = vld [vmem:[#allocation2] sm:$0xff]
    %v60 = vld [vmem:[#allocation5] sm:$0xf]
    %v61 = vld [vmem:[#allocation5 + $0x4] sm:$0xf]
    %v62 = vld [vmem:[#allocation5 + $0x8] sm:$0xf]
    %v63 = vld [vmem:[#allocation5 + $0xc] sm:$0xf]
    %v64 = vld [vmem:[#allocation5 + $0x10] sm:$0xf]
    %v65 = vld [vmem:[#allocation5 + $0x14] sm:$0xf]
    %v66 = vld [vmem:[#allocation5 + $0x18] sm:$0xf]
    %v67 = vld [vmem:[#allocation5 + $0x1c] sm:$0xf]
    %v68 = vld [vmem:[#allocation5 + $0x20] sm:$0xf]
    %v69 = vld [vmem:[#allocation5 + $0x24] sm:$0xf]
    %v70 = vld [vmem:[#allocation5 + $0x28] sm:$0xf]
    %v71 = vld [vmem:[#allocation5 + $0x2c] sm:$0xf]
    %v72 = vld [vmem:[#allocation5 + $0x30] sm:$0xf]
    %v73 = vld [vmem:[#allocation5 + $0x34] sm:$0xf]
    %v74 = vld [vmem:[#allocation5 + $0x38] sm:$0xf]
    %v75 = vld [vmem:[#allocation5 + $0x3c] sm:$0xf]
    %v76 = vld [vmem:[#allocation5 + $0x40] sm:$0xf]
    %v77 = vld [vmem:[#allocation5 + $0x44] sm:$0xf]
    %v78 = vld [vmem:[#allocation5 + $0x48] sm:$0xf]
    %v79 = vld [vmem:[#allocation5 + $0x4c] sm:$0xf]
    %v80 = vld [vmem:[#allocation5 + $0x50] sm:$0xf]
    %v81 = vld [vmem:[#allocation5 + $0x54] sm:$0xf]
    %v82 = vld [vmem:[#allocation5 + $0x58] sm:$0xf]
    %v83 = vld [vmem:[#allocation5 + $0x5c] sm:$0xf]
    %v84 = vld [vmem:[#allocation5 + $0x60] sm:$0xf]
    %v85 = vld [vmem:[#allocation5 + $0x64] sm:$0xf]
    %v86 = vld [vmem:[#allocation5 + $0x68] sm:$0xf]
    %v87 = vld [vmem:[#allocation5 + $0x6c] sm:$0xf]
    %v88 = vld [vmem:[#allocation5 + $0x70] sm:$0xf]
    %v89 = vld [vmem:[#allocation5 + $0x74] sm:$0xf]
    %v90 = vld [vmem:[#allocation5 + $0x78] sm:$0xf]
    %v91 = vld [vmem:[#allocation5 + $0x7c] sm:$0xf]
    %v92 = vlaneseq
    %v93 = vshrl.u32 %v92, 7
    %v94 = vsub.s32 0, %v93
    %v95 = vrot.slane %v58, %v94
    %v97 = vunpack.c.l.b16 %v59
    %v98 = vunpack.c.h.b16 %v59
    %v99 = vpack.c.b16 %v97, %v97
    %v100 = vpack.c.b16 %v98, %v98
    %v135 = vunpack.c.l.b16 %v60
    %v136 = vunpack.c.l.b16 %v61
    %v137 = vunpack.c.l.b16 %v62
    %v138 = vunpack.c.l.b16 %v63
    %v139 = vunpack.c.l.b16 %v64
    %v140 = vunpack.c.l.b16 %v65
    %v141 = vunpack.c.l.b16 %v66
    %v142 = vunpack.c.l.b16 %v67
    %v143 = vunpack.c.l.b16 %v68
    %v144 = vunpack.c.l.b16 %v69
    %v145 = vunpack.c.l.b16 %v70
    %v146 = vunpack.c.l.b16 %v71
    %v147 = vunpack.c.l.b16 %v72
    %v148 = vunpack.c.l.b16 %v73
    %v149 = vunpack.c.l.b16 %v74
    %v150 = vunpack.c.l.b16 %v75
    %v151 = vunpack.c.l.b16 %v76
    %v152 = vunpack.c.l.b16 %v77
    %v153 = vunpack.c.l.b16 %v78
    %v154 = vunpack.c.l.b16 %v79
    %v155 = vunpack.c.l.b16 %v80
    %v156 = vunpack.c.l.b16 %v81
    %v157 = vunpack.c.l.b16 %v82
    %v158 = vunpack.c.l.b16 %v83
    %v159 = vunpack.c.l.b16 %v84
    %v160 = vunpack.c.l.b16 %v85
    %v161 = vunpack.c.l.b16 %v86
    %v162 = vunpack.c.l.b16 %v87
    %v163 = vunpack.c.l.b16 %v88
    %v164 = vunpack.c.l.b16 %v89
    %v165 = vunpack.c.l.b16 %v90
    %v166 = vunpack.c.l.b16 %v91
    %v167 = vpack.c.b16 %v136, %v135
    %v168 = vpack.c.b16 %v138, %v137
    %v169 = vpack.c.b16 %v140, %v139
    %v170 = vpack.c.b16 %v142, %v141
    %v171 = vpack.c.b16 %v144, %v143
    %v172 = vpack.c.b16 %v146, %v145
    %v173 = vpack.c.b16 %v148, %v147
    %v174 = vpack.c.b16 %v150, %v149
    %v175 = vpack.c.b16 %v152, %v151
    %v176 = vpack.c.b16 %v154, %v153
    %v177 = vpack.c.b16 %v156, %v155
    %v178 = vpack.c.b16 %v158, %v157
    %v179 = vpack.c.b16 %v160, %v159
    %v180 = vpack.c.b16 %v162, %v161
    %v181 = vpack.c.b16 %v164, %v163
    %v182 = vpack.c.b16 %v166, %v165
    %199 = vmatprep.subr.bf16.mxu0 0
    %200 = vmatpush1.bf16.msra.mxu0 %v167
    %201 = vmatprep.subr.bf16.mxu0 0
    %202 = vmatpush1.bf16.msra.mxu0 %v168
    %203 = vmatprep.subr.bf16.mxu0 0
    %204 = vmatpush1.bf16.msra.mxu0 %v169
    %205 = vmatprep.subr.bf16.mxu0 0
    %206 = vmatpush1.bf16.msra.mxu0 %v170
    %207 = vmatprep.subr.bf16.mxu0 0
    %208 = vmatpush1.bf16.msra.mxu0 %v171
    %209 = vmatprep.subr.bf16.mxu0 0
    %210 = vmatpush1.bf16.msra.mxu0 %v172
    %211 = vmatprep.subr.bf16.mxu0 0
    %212 = vmatpush1.bf16.msra.mxu0 %v173
    %213 = vmatprep.subr.bf16.mxu0 0
    %214 = vmatpush1.bf16.msra.mxu0 %v174
    %215 = vmatprep.subr.bf16.mxu0 0
    %216 = vmatpush1.bf16.msra.mxu0 %v175
    %217 = vmatprep.subr.bf16.mxu0 0
    %218 = vmatpush1.bf16.msra.mxu0 %v176
    %219 = vmatprep.subr.bf16.mxu0 0
    %220 = vmatpush1.bf16.msra.mxu0 %v177
    %221 = vmatprep.subr.bf16.mxu0 0
    %222 = vmatpush1.bf16.msra.mxu0 %v178
    %223 = vmatprep.subr.bf16.mxu0 0
    %224 = vmatpush1.bf16.msra.mxu0 %v179
    %225 = vmatprep.subr.bf16.mxu0 0
    %226 = vmatpush1.bf16.msra.mxu0 %v180
    %227 = vmatprep.subr.bf16.mxu0 0
    %228 = vmatpush1.bf16.msra.mxu0 %v181
    %229 = vmatprep.subr.bf16.mxu0 0
    %230 = vmatpush1.bf16.msra.mxu0 %v182
    %231 = vmatprep.mubr.bf16.mxu0 %v100
    %232 = vmatmul.mubr.bf16.gmra.mrb[0].mxu0 %v99
    %v233 = vpop.f32.mrb[0].mxu0
    %v234 = vadd.f32 %v95, %v233
    %v235 = vpop.f32.mrb[0].mxu0
    %v236 = vpop.f32.mrb[0].mxu0
    %v237 = vpop.f32.mrb[0].mxu0
    %238 = vdwg.mxu0
    %v239 = vmul.f32 %v234, 0.5
    %v240 = vmul.f32 %v234, 0.70710677
    %v241 = verf.f32.pop %v240
    %v242 = vadd.f32 %v241, 1.0
    %v243 = vmul.f32 %v239, %v242
    %v244 = vpack.c.bf16 %v243, %v243
    %v245 = vld [vmem:[#allocation7] sm:$0xf]
    %v246 = vld [vmem:[#allocation7 + $0x4] sm:$0xf]
    %v247 = vld [vmem:[#allocation7 + $0x8] sm:$0xf]
    %v248 = vld [vmem:[#allocation7 + $0xc] sm:$0xf]
    %v249 = vld [vmem:[#allocation7 + $0x10] sm:$0xf]
    %v250 = vld [vmem:[#allocation7 + $0x14] sm:$0xf]
    %v251 = vld [vmem:[#allocation7 + $0x18] sm:$0xf]
    %v252 = vld [vmem:[#allocation7 + $0x1c] sm:$0xf]
    %v253 = vld [vmem:[#allocation7 + $0x20] sm:$0xf]
    %v254 = vld [vmem:[#allocation7 + $0x24] sm:$0xf]
    %v255 = vld [vmem:[#allocation7 + $0x28] sm:$0xf]
    %v256 = vld [vmem:[#allocation7 + $0x2c] sm:$0xf]
    %v257 = vld [vmem:[#allocation7 + $0x30] sm:$0xf]
    %v258 = vld [vmem:[#allocation7 + $0x34] sm:$0xf]
    %v259 = vld [vmem:[#allocation7 + $0x38] sm:$0xf]
    %v260 = vld [vmem:[#allocation7 + $0x3c] sm:$0xf]
    %v261 = vlaneseq
    %v262 = vshrl.u32 %v261, 7
    %v263 = vsub.s32 1, %v262
    %v264 = vrot.slane %v58, %v263
    %v281 = vunpack.c.l.b16 %v245
    %v282 = vunpack.c.l.b16 %v246
    %v283 = vunpack.c.l.b16 %v247
    %v284 = vunpack.c.l.b16 %v248
    %v285 = vunpack.c.l.b16 %v249
    %v286 = vunpack.c.l.b16 %v250
    %v287 = vunpack.c.l.b16 %v251
    %v288 = vunpack.c.l.b16 %v252
    %v289 = vunpack.c.l.b16 %v253
    %v290 = vunpack.c.l.b16 %v254
    %v291 = vunpack.c.l.b16 %v255
    %v292 = vunpack.c.l.b16 %v256
    %v293 = vunpack.c.l.b16 %v257
    %v294 = vunpack.c.l.b16 %v258
    %v295 = vunpack.c.l.b16 %v259
    %v296 = vunpack.c.l.b16 %v260
    %v297 = vpack.c.b16 %v282, %v281
    %v298 = vpack.c.b16 %v284, %v283
    %v299 = vpack.c.b16 %v286, %v285
    %v300 = vpack.c.b16 %v288, %v287
    %v301 = vpack.c.b16 %v290, %v289
    %v302 = vpack.c.b16 %v292, %v291
    %v303 = vpack.c.b16 %v294, %v293
    %v304 = vpack.c.b16 %v296, %v295
    %313 = vmatprep.subr.bf16.mxu0 0
    %314 = vmatpush1.bf16.msra.mxu0 %v297
    %315 = vmatprep.subr.bf16.mxu0 0
    %316 = vmatpush1.bf16.msra.mxu0 %v298
    %317 = vmatprep.subr.bf16.mxu0 0
    %318 = vmatpush1.bf16.msra.mxu0 %v299
    %319 = vmatprep.subr.bf16.mxu0 0
    %320 = vmatpush1.bf16.msra.mxu0 %v300
    %321 = vmatprep.subr.bf16.mxu0 0
    %322 = vmatpush1.bf16.msra.mxu0 %v301
    %323 = vmatprep.subr.bf16.mxu0 0
    %324 = vmatpush1.bf16.msra.mxu0 %v302
    %325 = vmatprep.subr.bf16.mxu0 0
    %326 = vmatpush1.bf16.msra.mxu0 %v303
    %327 = vmatprep.subr.bf16.mxu0 0
    %328 = vmatpush1.bf16.msra.mxu0 %v304
    %329 = vmatprep.subr.bf16.mxu0 0
    %330 = vmatpush1.bf16.msra.mxu0 0
    %331 = vmatprep.subr.bf16.mxu0 0
    %332 = vmatpush1.bf16.msra.mxu0 0
    %333 = vmatprep.subr.bf16.mxu0 0
    %334 = vmatpush1.bf16.msra.mxu0 0
    %335 = vmatprep.subr.bf16.mxu0 0
    %336 = vmatpush1.bf16.msra.mxu0 0
    %337 = vmatprep.subr.bf16.mxu0 0
    %338 = vmatpush1.bf16.msra.mxu0 0
    %339 = vmatprep.subr.bf16.mxu0 0
    %340 = vmatpush1.bf16.msra.mxu0 0
    %341 = vmatprep.subr.bf16.mxu0 0
    %342 = vmatpush1.bf16.msra.mxu0 0
    %343 = vmatprep.subr.bf16.mxu0 0
    %344 = vmatpush1.bf16.msra.mxu0 0
    %345 = vmatprep.mubr.bf16.mxu0 0
    %346 = vmatmul.mubr.bf16.gmra.mrb[0].mxu0 %v244
    %v347 = vpop.f32.mrb[0].mxu0
    %v348 = vadd.f32 %v264, %v347
    %v349 = vpop.f32.mrb[0].mxu0
    %v350 = vpop.f32.mrb[0].mxu0
    %v351 = vpop.f32.mrb[0].mxu0
    %352 = vdwg.mxu0
    %v353 = vadd.f32 %v348, %v234
    %354 = vadd.xlane.f32.xlu0 %v353
    %v355 = vpop.xlane.xlu0 %354
    %v356 = vmul.f32 %v353, %v353
    %357 = vadd.xlane.f32.xlu0 %v356
    %v358 = vpop.xlane.xlu0 %357
    %v359 = vmul.f32 %v355, 0.0078125
    %v360 = vmul.f32 %v358, 0.0078125
    %v361 = vmul.f32 %v359, %v359
    %v362 = vsub.f32 %v360, %v361
    %v363 = vmax.f32 %v362, 0.0
    %v364 = vsub.f32 %v353, %v359
    %v365 = vadd.f32 %v363, 1e-05
    %v366 = vrsqrt.pop %v365
    %v367 = vmul.f32 %v364, %v366
    %v368 = vlaneseq
    %v369 = vshrl.u32 %v368, 7
    %v370 = vsub.s32 2, %v369
    %v371 = vrot.slane %v58, %v370
    %v372 = vmul.f32 %v367, %v371
    %v373 = vlaneseq
    %v374 = vshrl.u32 %v373, 7
    %v375 = vsub.s32 3, %v374
    %v376 = vrot.slane %v58, %v375
    %v377 = vadd.f32 %v372, %v376
    %378 = vst [vmem:[#allocation8] sm:$0xff] %v377
    // Predicated region
    $region30: #{tpu_custom_call.1} parent=1 // pred_check
      _
    $region31: #{tpu_custom_call.1} parent=1 // pred_check_branch
      %380 = sbr.rel (0) target = $region33
    $region32: #{tpu_custom_call.1} parent=1 // pred_region
      %s382 = ssub.s32 128, 128
      %383 = vsyncadd [#allocation4], %s382
      %s385 = sshll.u32 [#allocation8], 4
      %s386 = int_to_ptr.vmem [resolvable:$true] %s385
      %388 = dma.vmem_to_hbm [thread:$0]  %s386, 128, %s4, [#allocation4]
    $region33: #{tpu_custom_call.1} parent=1 // pred_fallthru
      _
    // Predicated region
    $region34: #{tpu_custom_call.1} parent=1 // pred_check
      _
    $region35: #{tpu_custom_call.1} parent=1 // pred_check_branch
      %390 = sbr.rel (0) target = $region37
    $region36: #{tpu_custom_call.1} parent=1 // pred_region
      %391 = dma.done [#allocation4], 128
    $region37: #{tpu_custom_call.1} parent=1 // pred_fallthru
      _
    %392 = vsyncpa [#allocation3], 1
    %393 = vsyncpa [#allocation6], 1
    %394 = vsyncpa [#allocation4], 1

</llo_original>
